<compile_context>
chip_gen: v5e
topology: v5e:2x2
jax: 0.10.0
libtpu: 0.0.40
codegen_flags: <defaults>
</compile_context>

<pallas_src>
import functools

import jax
import jax.numpy as jnp
from jax.experimental import pallas as pl
from jax.experimental.pallas import tpu as pltpu


def _vmem_capacity_bytes():
    """Physical VMEM capacity in bytes; conservative fallback if unqueriable."""
    try:
        info = pltpu.get_tpu_info()
        cap = getattr(info, "vmem_capacity_bytes", None)
        if cap:
            return int(cap)
    except Exception:
        pass
    return 64 << 20  # v7x-sized conservative default


def _packing_factor(n_rows, num_channels):
    """Largest power-of-two k with k*C <= 128 lanes and k | n_rows, so the
    packed (N/k, k*C) view is a free row-major reshape (no pad, no slice)."""
    if num_channels >= 128 or 128 % num_channels != 0:
        # TODO(synk): lcm-based packing for C values that do not divide 128
        #             (e.g. 24, 48, 96, 192) to avoid masked partial stores.
        return 1
    k = 128 // num_channels            # power of two (128 = 2**7)
    while k > 1 and n_rows % k != 0:
        k //= 2
    return k


# ----------------------------------------------------------------------------
# Kernel 1 (two-pass path): per-column reduction over packed rows.
# Grid (splits, row_tiles): leading axis is "parallel" (megacore on v7x), each
# split accumulates into its own (1,1,W) resident output block; the row-tile
# axis is the "arbitrary" reduction axis.
# ----------------------------------------------------------------------------
def _stats_kernel(x_ref, sum_ref, sumsq_ref, *, tile_rows, tiles_per_split,
                  total_rows, needs_mask):
    i = pl.program_id(1)

    @pl.when(i == 0)
    def _init():
        sum_ref[...] = jnp.zeros_like(sum_ref)
        sumsq_ref[...] = jnp.zeros_like(sumsq_ref)

    x = x_ref[...].astype(jnp.float32)                 # (tile_rows, W)
    if needs_mask:
        # Ragged tail / padded grid steps: zero logically out-of-range rows.
        c = pl.program_id(0)
        rows_left = total_rows - (c * tiles_per_split + i) * tile_rows
        valid = jax.lax.broadcasted_iota(jnp.int32, x.shape, 0) < rows_left
        x = jnp.where(valid, x, 0.0)
    sum_ref[...] += jnp.sum(x, axis=0, keepdims=True)[None]
    sumsq_ref[...] += jnp.sum(x * x, axis=0, keepdims=True)[None]


# ----------------------------------------------------------------------------
# Kernel 2 (two-pass path): elementwise y = x * scale + shift on packed rows.
# ----------------------------------------------------------------------------
def _apply_kernel(x_ref, scale_ref, shift_ref, o_ref):
    x = x_ref[...].astype(jnp.float32)
    o_ref[...] = (x * scale_ref[...] + shift_ref[...]).astype(o_ref.dtype)


# ----------------------------------------------------------------------------
# Kernel 3 (fused path): whole (packed) feature slab resident in VMEM.
# Stats + normalize in a single HBM read + write.  The k packed groups are
# all-reduced with a (W,W) 0/1 fold matmul (MXU), keeping everything 128-lane
# dense -- no narrow masked stores, no re-tile of scale/shift needed.
# ----------------------------------------------------------------------------
def _fused_kernel(x_ref, gamma_ref, beta_ref, o_ref, mean_ref, var_ref, *,
                  eps, inv_n, num_channels, pack):
    x = x_ref[...].astype(jnp.float32)                 # (R, W)
    w = x.shape[-1]

    if pack > 1:
        # fold[a, b] = 1 iff a == b (mod C):  (v @ fold)[b] = per-channel total,
        # replicated into every packed group.
        ia = jax.lax.broadcasted_iota(jnp.int32, (w, w), 0) % num_channels
        ib = jax.lax.broadcasted_iota(jnp.int32, (w, w), 1) % num_channels
        fold = (ia == ib).astype(jnp.float32)

        def group_allreduce(v):                        # (1, W) -> (1, W)
            return jnp.dot(v, fold, preferred_element_type=jnp.float32)
    else:
        def group_allreduce(v):
            return v

    mean = group_allreduce(jnp.sum(x, axis=0, keepdims=True)) * inv_n
    d = x - mean                                       # centered: accurate var
    var = jnp.maximum(group_allreduce(jnp.sum(d * d, axis=0, keepdims=True)) * inv_n, 0.0)

    scale = gamma_ref[...] * jax.lax.rsqrt(var + eps)
    shift = beta_ref[...] - mean * scale
    o_ref[...] = (x * scale + shift).astype(o_ref.dtype)
    mean_ref[...] = mean
    var_ref[...] = var


def minkowski_sync_batchnorm(
    feats,
    gamma,
    beta,
    running_mean,
    running_var,
    *,
    eps=1e-5,
    momentum=0.1,
    training=True,
    target_tile_bytes=2 << 20,      # per-input row tile (in input dtype)
    fuse_threshold_bytes=None,      # None -> derived from chip VMEM capacity
    stats_core_splits=2,            # leading "parallel" axis for the stats pass
):
    """Forward pass of MinkowskiSyncBatchNorm on features F of shape [N, C]."""
    N, C = feats.shape
    out_dtype = feats.dtype
    in_bytes = jnp.dtype(feats.dtype).itemsize
    out_bytes = jnp.dtype(out_dtype).itemsize
    vmem_cap = _vmem_capacity_bytes()

    k = _packing_factor(N, C)
    W = k * C
    R = N // k

    gamma_f = gamma.astype(jnp.float32).reshape(-1)
    beta_f = beta.astype(jnp.float32).reshape(-1)

    # ---------------- fused whole-slab path (training, slab fits VMEM) ------
    # Rough VMEM need: input block + f32 copy + centered temp + output block.
    fused_need = N * C * (2 * in_bytes + 12 + 2 * out_bytes) + (2 << 20)
    if fuse_threshold_bytes is None:
        fuse_ok = fused_need <= (vmem_cap * 6) // 10
    else:
        fuse_ok = N * C * 4 <= fuse_threshold_bytes

    if training and fuse_ok:
        x_packed = feats.reshape(R, W)                 # free row-major bitcast
        gamma_w = jnp.tile(gamma_f, k).reshape(1, W)
        beta_w = jnp.tile(beta_f, k).reshape(1, W)
        fused_vmem = int(min(vmem_cap - (2 << 20),
                             max(fused_need + (4 << 20), 32 << 20)))
        out_p, mean_w, var_w = pl.pallas_call(
            functools.partial(_fused_kernel, eps=float(eps), inv_n=1.0 / N,
                              num_channels=C, pack=k),
            out_shape=(
                jax.ShapeDtypeStruct((R, W), out_dtype),
                jax.ShapeDtypeStruct((1, W), jnp.float32),
                jax.ShapeDtypeStruct((1, W), jnp.float32),
            ),
            grid=(1,),
            in_specs=[
                pl.BlockSpec((R, W), lambda i: (0, 0)),
                pl.BlockSpec((1, W), lambda i: (0, 0)),
                pl.BlockSpec((1, W), lambda i: (0, 0)),
            ],
            out_specs=(
                pl.BlockSpec((R, W), lambda i: (0, 0)),
                pl.BlockSpec((1, W), lambda i: (0, 0)),
                pl.BlockSpec((1, W), lambda i: (0, 0)),
            ),
            compiler_params=pltpu.CompilerParams(vmem_limit_bytes=fused_vmem),
        )(x_packed, gamma_w, beta_w)

        out = out_p.reshape(N, C)
        mean = mean_w[0, :C]
        var = var_w[0, :C]
        unbiased = var * (N / max(N - 1, 1))
        new_rm = (1.0 - momentum) * running_mean + momentum * mean
        new_rv = (1.0 - momentum) * running_var + momentum * unbiased
        return out, new_rm, new_rv

    # ---------------- streaming two-pass path (large slabs / eval) ----------
    x_packed = feats.reshape(R, W)                     # free bitcast, no pad

    bytes_per_packed_row = W * max(in_bytes, out_bytes)
    tile_rows = max(16, (target_tile_bytes // bytes_per_packed_row) // 16 * 16)
    if tile_rows >= R:
        tile_rows = R                                  # single full-extent tile
    grid_rows = pl.cdiv(R, tile_rows)

    if training:
        splits = max(1, min(stats_core_splits, grid_rows))
        tiles_per_split = pl.cdiv(grid_rows, splits)
        needs_mask = splits * tiles_per_split * tile_rows != R
        last_block = grid_rows - 1

        def x_index(c, i):
            # Clamp so padded grid steps never issue out-of-bounds DMAs; their
            # contribution is zeroed by the in-kernel row mask.
            return (jnp.minimum(c * tiles_per_split + i, last_block), 0)

        stats_vmem = int(min(vmem_cap - (2 << 20),
                             max(4 * tile_rows * W * in_bytes + (2 << 20), 32 << 20)))
        s_p, ss_p = pl.pallas_call(
            functools.partial(_stats_kernel, tile_rows=tile_rows,
                              tiles_per_split=tiles_per_split,
                              total_rows=R, needs_mask=needs_mask),
            out_shape=(
                jax.ShapeDtypeStruct((splits, 1, W), jnp.float32),
                jax.ShapeDtypeStruct((splits, 1, W), jnp.float32),
            ),
            grid=(splits, tiles_per_split),
            in_specs=[pl.BlockSpec((tile_rows, W), x_index)],
            out_specs=(
                pl.BlockSpec((1, 1, W), lambda c, i: (c, 0, 0)),
                pl.BlockSpec((1, 1, W), lambda c, i: (c, 0, 0)),
            ),
            compiler_params=pltpu.CompilerParams(
                dimension_semantics=("parallel", "arbitrary"),
                vmem_limit_bytes=stats_vmem),
        )(x_packed)

        # Fold the core-split and k packed-group partials back to per-channel.
        s = jnp.sum(s_p.reshape(-1, C), axis=0)
        ss = jnp.sum(ss_p.reshape(-1, C), axis=0)
        mean = s / N
        # TODO(synk): single-pass E[x^2]-mean^2 can cancel for |mean| >> std; a
        #             shifted / Welford per-tile combine would be more robust.
        var = jnp.maximum(ss / N - mean * mean, 0.0)
        unbiased = var * (N / max(N - 1, 1))
        new_rm = (1.0 - momentum) * running_mean + momentum * mean
        new_rv = (1.0 - momentum) * running_var + momentum * unbiased
    else:
        mean = running_mean.astype(jnp.float32)
        var = running_var.astype(jnp.float32)
        new_rm, new_rv = running_mean, running_var

    # Precompute scale / shift once; apply kernel is a pure FMA.
    scale = gamma_f * jax.lax.rsqrt(var + eps)
    shift = beta_f - mean * scale
    scale_w = jnp.tile(scale, k).reshape(1, W)
    shift_w = jnp.tile(shift, k).reshape(1, W)

    apply_vmem = int(min(vmem_cap - (2 << 20),
                         max(2 * tile_rows * W * (in_bytes + out_bytes) + (2 << 20),
                             32 << 20)))
    out_p = pl.pallas_call(
        _apply_kernel,
        out_shape=jax.ShapeDtypeStruct((R, W), out_dtype),
        grid=(grid_rows,),
        in_specs=[
            pl.BlockSpec((tile_rows, W), lambda i: (i, 0)),
            pl.BlockSpec((1, W), lambda i: (0, 0)),
            pl.BlockSpec((1, W), lambda i: (0, 0)),
        ],
        out_specs=pl.BlockSpec((tile_rows, W), lambda i: (i, 0)),
        compiler_params=pltpu.CompilerParams(
            dimension_semantics=("parallel",),
            vmem_limit_bytes=apply_vmem),
    )(x_packed, scale_w, shift_w)

    out = out_p.reshape(N, C)                          # free bitcast, no slice
    return out, new_rm, new_rv


# ----------------------------------------------------------------------------
# References
# ----------------------------------------------------------------------------
def _reference_bn_train(feats, gamma, beta, eps):
    x = feats.astype(jnp.float32)
    mean = jnp.mean(x, axis=0, keepdims=True)
    var = jnp.mean((x - mean) ** 2, axis=0, keepdims=True)
    y = (x - mean) * jax.lax.rsqrt(var + eps) * gamma[None, :] + beta[None, :]
    return y.astype(feats.dtype)


def _reference_bn_eval(feats, gamma, beta, rm, rv, eps):
    x = feats.astype(jnp.float32)
    y = (x - rm[None, :]) * jax.lax.rsqrt(rv[None, :] + eps) * gamma[None, :] + beta[None, :]
    return y.astype(feats.dtype)


if __name__ == "__main__":
    key = jax.random.PRNGKey(0)
    eps, momentum = 1e-5, 0.1

    C = 16                                   # num_features (points x channels)
    gamma = 1.0 + 0.01 * jnp.arange(C, dtype=jnp.float32)
    beta = 0.05 * jnp.arange(C, dtype=jnp.float32)
    rm0 = jnp.zeros((C,), dtype=jnp.float32)
    rv0 = jnp.ones((C,), dtype=jnp.float32)
    k1, k2, k3, k4, k5, k6 = jax.random.split(key, 6)

    # --- Test 1: training, small slab -> fused lane-dense (W=128) kernel -----
    feats1 = jax.random.normal(k1, (64, C), dtype=jnp.float32) * 2.0 + 0.5
    out1, rm1, rv1 = minkowski_sync_batchnorm(
        feats1, gamma, beta, rm0, rv0, eps=eps, momentum=momentum, training=True)
    jax.block_until_ready((out1, rm1, rv1))
    ref1 = _reference_bn_train(feats1, gamma, beta, eps)
    assert jnp.allclose(out1, ref1, atol=1e-4, rtol=1e-4), "fused path mismatch"
    m1 = jnp.mean(feats1, axis=0)
    v1 = jnp.var(feats1, axis=0, ddof=1)
    assert jnp.allclose(rm1, 0.9 * rm0 + 0.1 * m1, atol=1e-4, rtol=1e-4)
    assert jnp.allclose(rv1, 0.9 * rv0 + 0.1 * v1, atol=1e-4, rtol=1e-4)

    # --- Test 2: training, two-pass packed path, ragged row tiles ------------
    feats2 = jax.random.normal(k2, (200, C), dtype=jnp.float32) * 1.3 - 0.2
    out2, rm2, rv2 = minkowski_sync_batchnorm(
        feats2, gamma, beta, rm0, rv0, eps=eps, momentum=momentum, training=True,
        fuse_threshold_bytes=0,          # force two-pass path
        target_tile_bytes=8192)          # force multi-tile, masked last tile
    jax.block_until_ready((out2, rm2, rv2))
    ref2 = _reference_bn_train(feats2, gamma, beta, eps)
    assert jnp.allclose(out2, ref2, atol=1e-4, rtol=1e-4), "two-pass path mismatch"
    m2 = jnp.mean(feats2, axis=0)
    v2 = jnp.var(feats2, axis=0, ddof=1)
    assert jnp.allclose(rm2, 0.9 * rm0 + 0.1 * m2, atol=1e-4, rtol=1e-4)
    assert jnp.allclose(rv2, 0.9 * rv0 + 0.1 * v2, atol=1e-4, rtol=1e-4)

    # --- Test 3: eval mode (running stats) ------------------------------------
    rm_e = 0.1 * jnp.arange(C, dtype=jnp.float32)
    rv_e = 1.0 + 0.02 * jnp.arange(C, dtype=jnp.float32)
    feats3 = jax.random.normal(k3, (64, C), dtype=jnp.float32)
    out3, _, _ = minkowski_sync_batchnorm(
        feats3, gamma, beta, rm_e, rv_e, eps=eps, momentum=momentum, training=False)
    jax.block_until_ready(out3)
    ref3 = _reference_bn_eval(feats3, gamma, beta, rm_e, rv_e, eps)
    assert jnp.allclose(out3, ref3, atol=1e-4, rtol=1e-4), "eval path mismatch"

    # --- Test 4: training, odd N -> unpacked fallback (k=1), masked tail -----
    feats4 = jax.random.normal(k4, (203, C), dtype=jnp.float32) * 1.1 + 0.3
    out4, _, _ = minkowski_sync_batchnorm(
        feats4, gamma, beta, rm0, rv0, eps=eps, momentum=momentum, training=True,
        fuse_threshold_bytes=0, target_tile_bytes=8192)
    jax.block_until_ready(out4)
    ref4 = _reference_bn_train(feats4, gamma, beta, eps)
    assert jnp.allclose(out4, ref4, atol=1e-4, rtol=1e-4), "odd-N fallback mismatch"

    # --- Test 5: training, C=128 (already lane dense, k=1) fused path --------
    C5 = 128
    gamma5 = 1.0 + 0.001 * jnp.arange(C5, dtype=jnp.float32)
    beta5 = 0.01 * jnp.arange(C5, dtype=jnp.float32)
    feats5 = jax.random.normal(k5, (32, C5), dtype=jnp.float32)
    out5, _, _ = minkowski_sync_batchnorm(
        feats5, gamma5, beta5, jnp.zeros((C5,), jnp.float32),
        jnp.ones((C5,), jnp.float32), eps=eps, momentum=momentum, training=True)
    jax.block_until_ready(out5)
    ref5 = _reference_bn_train(feats5, gamma5, beta5, eps)
    assert jnp.allclose(out5, ref5, atol=1e-4, rtol=1e-4), "C=128 fused mismatch"

    # --- Test 6: bf16 input, two-pass packed path -----------------------------
    feats6 = (jax.random.normal(k6, (256, C), dtype=jnp.float32) * 1.5 + 0.3
              ).astype(jnp.bfloat16)
    out6, _, _ = minkowski_sync_batchnorm(
        feats6, gamma, beta, rm0, rv0, eps=eps, momentum=momentum, training=True,
        fuse_threshold_bytes=0, target_tile_bytes=4096)
    jax.block_until_ready(out6)
    ref6 = _reference_bn_train(feats6, gamma, beta, eps)
    assert jnp.allclose(out6.astype(jnp.float32), ref6.astype(jnp.float32),
                        atol=5e-2, rtol=5e-2), "bf16 path mismatch"

    print("KERNEL_OK")
</pallas_src>

<mosaic_0001>
module attributes {stable_mosaic.version = 11 : i64} {
  func.func @_fused_kernel(%arg0: i32, %arg1: memref<8x128xf32, #tpu.memory_space<vmem>>, %arg2: memref<1x128xf32, #tpu.memory_space<vmem>>, %arg3: memref<1x128xf32, #tpu.memory_space<vmem>>, %arg4: memref<8x128xf32, #tpu.memory_space<vmem>>, %arg5: memref<1x128xf32, #tpu.memory_space<vmem>>, %arg6: memref<1x128xf32, #tpu.memory_space<vmem>>) attributes {dimension_semantics = [#tpu.dimension_semantics<arbitrary>], iteration_bounds = array<i64: 1>, scalar_prefetch = 0 : i64, scratch_operands = 0 : i64, tpu.core_type = #tpu.core_type<tc>, window_params = [{pipeline_mode = #tpu.pipeline_mode<synchronous>, transform_indices = @transform_0, window_bounds = array<i64: 8, 128>}, {pipeline_mode = #tpu.pipeline_mode<synchronous>, transform_indices = @transform_1, window_bounds = array<i64: 1, 128>}, {pipeline_mode = #tpu.pipeline_mode<synchronous>, transform_indices = @transform_2, window_bounds = array<i64: 1, 128>}, {pipeline_mode = #tpu.pipeline_mode<synchronous>, transform_indices = @transform_3, window_bounds = array<i64: 8, 128>}, {pipeline_mode = #tpu.pipeline_mode<synchronous>, transform_indices = @transform_4, window_bounds = array<i64: 1, 128>}, {pipeline_mode = #tpu.pipeline_mode<synchronous>, transform_indices = @transform_5, window_bounds = array<i64: 1, 128>}]} {
    %c0 = arith.constant 0 : index
    %c0_0 = arith.constant 0 : index
    %0 = vector.load %arg1[%c0, %c0_0] : memref<8x128xf32, #tpu.memory_space<vmem>>, vector<8x128xf32>
    %1 = tpu.iota {dimensions = array<i32: 0>} : vector<128x128xi32>
    %c16_i32 = arith.constant 16 : i32
    %c0_i32 = arith.constant 0 : i32
    %2 = arith.cmpi eq, %c16_i32, %c0_i32 : i32
    %c1_i32 = arith.constant 1 : i32
    %3 = arith.select %2, %c1_i32, %c16_i32 : i32
    %4 = vector.broadcast %3 : i32 to vector<128x128xi32>
    %5 = arith.remsi %1, %4 : vector<128x128xi32>
    %c0_i32_1 = arith.constant 0 : i32
    %6 = vector.broadcast %c0_i32_1 : i32 to vector<128x128xi32>
    %7 = arith.cmpi ne, %5, %6 : vector<128x128xi32>
    %c0_i32_2 = arith.constant 0 : i32
    %8 = vector.broadcast %c0_i32_2 : i32 to vector<128x128xi32>
    %9 = arith.cmpi slt, %5, %8 : vector<128x128xi32>
    %c0_i32_3 = arith.constant 0 : i32
    %10 = arith.cmpi slt, %3, %c0_i32_3 : i32
    %11 = vector.broadcast %10 : i1 to vector<128x128xi1>
    %12 = vector.broadcast %11 : vector<128x128xi1> to vector<128x128xi1>
    %13 = arith.xori %9, %12 : vector<128x128xi1>
    %14 = arith.andi %13, %7 : vector<128x128xi1>
    %15 = vector.broadcast %3 : i32 to vector<128x128xi32>
    %16 = arith.addi %5, %15 : vector<128x128xi32>
    %17 = arith.select %14, %16, %5 : vector<128x128xi1>, vector<128x128xi32>
    %18 = tpu.iota {dimensions = array<i32: 1>} : vector<128x128xi32>
    %c16_i32_4 = arith.constant 16 : i32
    %c0_i32_5 = arith.constant 0 : i32
    %19 = arith.cmpi eq, %c16_i32_4, %c0_i32_5 : i32
    %c1_i32_6 = arith.constant 1 : i32
    %20 = arith.select %19, %c1_i32_6, %c16_i32_4 : i32
    %21 = vector.broadcast %20 : i32 to vector<128x128xi32>
    %22 = arith.remsi %18, %21 : vector<128x128xi32>
    %c0_i32_7 = arith.constant 0 : i32
    %23 = vector.broadcast %c0_i32_7 : i32 to vector<128x128xi32>
    %24 = arith.cmpi ne, %22, %23 : vector<128x128xi32>
    %c0_i32_8 = arith.constant 0 : i32
    %25 = vector.broadcast %c0_i32_8 : i32 to vector<128x128xi32>
    %26 = arith.cmpi slt, %22, %25 : vector<128x128xi32>
    %c0_i32_9 = arith.constant 0 : i32
    %27 = arith.cmpi slt, %20, %c0_i32_9 : i32
    %28 = vector.broadcast %27 : i1 to vector<128x128xi1>
    %29 = vector.broadcast %28 : vector<128x128xi1> to vector<128x128xi1>
    %30 = arith.xori %26, %29 : vector<128x128xi1>
    %31 = arith.andi %30, %24 : vector<128x128xi1>
    %32 = vector.broadcast %20 : i32 to vector<128x128xi32>
    %33 = arith.addi %22, %32 : vector<128x128xi32>
    %34 = arith.select %31, %33, %22 : vector<128x128xi1>, vector<128x128xi32>
    %35 = arith.cmpi eq, %17, %34 : vector<128x128xi32>
    %36 = arith.extui %35 : vector<128x128xi1> to vector<128x128xi32>
    %37 = arith.sitofp %36 : vector<128x128xi32> to vector<128x128xf32>
    %cst = arith.constant dense<0.000000e+00> : vector<128xf32>
    %38 = vector.multi_reduction <add>, %0, %cst [0] : vector<8x128xf32> to vector<128xf32>
    %39 = vector.shape_cast %38 : vector<128xf32> to vector<1x128xf32>
    %cst_10 = arith.constant dense<0.000000e+00> : vector<1x128xf32>
    %40 = tpu.matmul %39, %37, %cst_10 {dimension_numbers = #tpu.dot_dimension_numbers<[1], [0], [0], [1], [0, 0, 1, 1], [], []>} : vector<1x128xf32>, vector<128x128xf32>, vector<1x128xf32> -> vector<1x128xf32>
    %cst_11 = arith.constant 1.562500e-02 : f32
    %41 = vector.broadcast %cst_11 : f32 to vector<1x128xf32>
    %42 = arith.mulf %40, %41 : vector<1x128xf32>
    %43 = vector.broadcast %42 : vector<1x128xf32> to vector<8x128xf32>
    %44 = arith.subf %0, %43 : vector<8x128xf32>
    %45 = arith.mulf %44, %44 : vector<8x128xf32>
    %cst_12 = arith.constant dense<0.000000e+00> : vector<128xf32>
    %46 = vector.multi_reduction <add>, %45, %cst_12 [0] : vector<8x128xf32> to vector<128xf32>
    %47 = vector.shape_cast %46 : vector<128xf32> to vector<1x128xf32>
    %cst_13 = arith.constant dense<0.000000e+00> : vector<1x128xf32>
    %48 = tpu.matmul %47, %37, %cst_13 {dimension_numbers = #tpu.dot_dimension_numbers<[1], [0], [0], [1], [0, 0, 1, 1], [], []>} : vector<1x128xf32>, vector<128x128xf32>, vector<1x128xf32> -> vector<1x128xf32>
    %cst_14 = arith.constant 1.562500e-02 : f32
    %49 = vector.broadcast %cst_14 : f32 to vector<1x128xf32>
    %50 = arith.mulf %48, %49 : vector<1x128xf32>
    %cst_15 = arith.constant 0.000000e+00 : f32
    %51 = vector.broadcast %cst_15 : f32 to vector<1x128xf32>
    %52 = arith.maximumf %50, %51 : vector<1x128xf32>
    %c0_16 = arith.constant 0 : index
    %c0_17 = arith.constant 0 : index
    %53 = vector.load %arg2[%c0_16, %c0_17] : memref<1x128xf32, #tpu.memory_space<vmem>>, vector<1x128xf32>
    %cst_18 = arith.constant 9.99999974E-6 : f32
    %54 = vector.broadcast %cst_18 : f32 to vector<1x128xf32>
    %55 = arith.addf %52, %54 : vector<1x128xf32>
    %56 = math.rsqrt %55 : vector<1x128xf32>
    %57 = arith.mulf %53, %56 : vector<1x128xf32>
    %c0_19 = arith.constant 0 : index
    %c0_20 = arith.constant 0 : index
    %58 = vector.load %arg3[%c0_19, %c0_20] : memref<1x128xf32, #tpu.memory_space<vmem>>, vector<1x128xf32>
    %59 = arith.mulf %42, %57 : vector<1x128xf32>
    %60 = arith.subf %58, %59 : vector<1x128xf32>
    %61 = vector.broadcast %57 : vector<1x128xf32> to vector<8x128xf32>
    %62 = arith.mulf %0, %61 : vector<8x128xf32>
    %63 = vector.broadcast %60 : vector<1x128xf32> to vector<8x128xf32>
    %64 = arith.addf %62, %63 : vector<8x128xf32>
    %c0_21 = arith.constant 0 : index
    %c0_22 = arith.constant 0 : index
    %65 = vector.load %arg4[%c0_21, %c0_22] : memref<8x128xf32, #tpu.memory_space<vmem>>, vector<8x128xf32>
    tpu.vector_store %arg4[%c0_21, %c0_22], %64 {strides = array<i32>} : memref<8x128xf32, #tpu.memory_space<vmem>>, vector<8x128xf32>,
    %c0_23 = arith.constant 0 : index
    %c0_24 = arith.constant 0 : index
    %66 = vector.load %arg5[%c0_23, %c0_24] : memref<1x128xf32, #tpu.memory_space<vmem>>, vector<1x128xf32>
    tpu.vector_store %arg5[%c0_23, %c0_24], %42 {strides = array<i32>} : memref<1x128xf32, #tpu.memory_space<vmem>>, vector<1x128xf32>,
    %c0_25 = arith.constant 0 : index
    %c0_26 = arith.constant 0 : index
    %67 = vector.load %arg6[%c0_25, %c0_26] : memref<1x128xf32, #tpu.memory_space<vmem>>, vector<1x128xf32>
    tpu.vector_store %arg6[%c0_25, %c0_26], %52 {strides = array<i32>} : memref<1x128xf32, #tpu.memory_space<vmem>>, vector<1x128xf32>,
    return
  }
  func.func @transform_0(%arg0: i32) -> (i32, i32) {
    %c0_i32 = arith.constant 0 : i32
    %c0_i32_0 = arith.constant 0 : i32
    %c0_i32_1 = arith.constant 0 : i32
    return %c0_i32, %c0_i32_0 : i32, i32
  }
  func.func @transform_1(%arg0: i32) -> (i32, i32) {
    %c0_i32 = arith.constant 0 : i32
    %c0_i32_0 = arith.constant 0 : i32
    %c0_i32_1 = arith.constant 0 : i32
    return %c0_i32, %c0_i32_0 : i32, i32
  }
  func.func @transform_2(%arg0: i32) -> (i32, i32) {
    %c0_i32 = arith.constant 0 : i32
    %c0_i32_0 = arith.constant 0 : i32
    %c0_i32_1 = arith.constant 0 : i32
    return %c0_i32, %c0_i32_0 : i32, i32
  }
  func.func @transform_3(%arg0: i32) -> (i32, i32) {
    %c0_i32 = arith.constant 0 : i32
    %c0_i32_0 = arith.constant 0 : i32
    %c0_i32_1 = arith.constant 0 : i32
    return %c0_i32, %c0_i32_0 : i32, i32
  }
  func.func @transform_4(%arg0: i32) -> (i32, i32) {
    %c0_i32 = arith.constant 0 : i32
    %c0_i32_0 = arith.constant 0 : i32
    %c0_i32_1 = arith.constant 0 : i32
    return %c0_i32, %c0_i32_0 : i32, i32
  }
  func.func @transform_5(%arg0: i32) -> (i32, i32) {
    %c0_i32 = arith.constant 0 : i32
    %c0_i32_0 = arith.constant 0 : i32
    %c0_i32_1 = arith.constant 0 : i32
    return %c0_i32, %c0_i32_0 : i32, i32
  }
}

</mosaic_0001>

<llo_original>
// kernel: tpu_custom_call.1
$region0: #{tpu_custom_call.1}
  #allocation0 [shape = 'u32[]', space=smem, size = 0x4, offset = 0x4, fixed_abs, tag = 'smem constant byte address 0x4 - core index']
  #allocation1 [shape = 'u32[72,128]{1,0:T(1,128)}', space=vmem, size = 0x9000, scoped, tag = 'internal scratch']
  %s0 = inlined_call_operand.hbm [shape: f32[8,128], index: 0, kind: input, shape index: {}]
  %s1 = inlined_call_operand.hbm [shape: f32[1,128], index: 1, kind: input, shape index: {}]
  %s2 = inlined_call_operand.vmem [shape: f32[1,128], index: 2, kind: input, shape index: {}]
  %s3 = inlined_call_operand.hbm [shape: f32[8,128], index: 3, kind: output, shape index: {0}]
  %s4 = inlined_call_operand.hbm [shape: f32[1,128], index: 4, kind: output, shape index: {1}]
  %s5 = inlined_call_operand.hbm [shape: f32[1,128], index: 5, kind: output, shape index: {2}]
  %6 = xla_tuple %s3, %s4, %s5
  %s7 = sld [smem:[#allocation0]]
  $region46: #{tpu_custom_call.1} parent=0
    _
  %s9 = ssub.s32 1, %s7
  %s10 = scalar_select 0, %s9, %s7
  $region1: #{tpu_custom_call.1} parent=0
    #allocation2 [shape = 'u8[4096]{0}', space=vmem, size = 0x1000, scoped, tag = 'input window, operand 0, single buffered']
    #allocation3 [shape = 's32[1]{0}', space=sflag, size = 0x4, scoped, tag = 'scoped memory for tpu_custom_call.1']
    #allocation4 [shape = 's32[1]{0}', space=sflag, size = 0x4, scoped, tag = 'scoped memory for tpu_custom_call.1']
    #allocation5 [shape = 'u8[512]{0}', space=vmem, size = 0x400, scoped, tag = 'input window, operand 1, single buffered']
    #allocation6 [shape = 's32[1]{0}', space=sflag, size = 0x4, scoped, tag = 'scoped memory for tpu_custom_call.1']
    #allocation7 [shape = 'u8[4096]{0}', space=vmem, size = 0x1000, scoped, tag = 'output window, operand 0, single buffered']
    #allocation8 [shape = 'u8[512]{0}', space=vmem, size = 0x400, scoped, tag = 'output window, operand 1, single buffered']
    #allocation9 [shape = 's32[1]{0}', space=sflag, size = 0x4, scoped, tag = 'scoped memory for tpu_custom_call.1']
    #allocation10 [shape = 'u8[512]{0}', space=vmem, size = 0x400, scoped, tag = 'output window, operand 2, single buffered']
    %11 = vsyncpa [#allocation3], 0
    %12 = vsyncpa [#allocation6], 0
    %13 = vsyncpa [#allocation4], 0
    %14 = vsyncpa [#allocation9], 0
    // Predicated region
    $region2: #{tpu_custom_call.1} parent=1 // pred_check
      _
    $region3: #{tpu_custom_call.1} parent=1 // pred_check_branch
      %16 = sbr.rel (0) target = $region5
    $region4: #{tpu_custom_call.1} parent=1 // pred_region
      %18 = vsyncadd [#allocation3], 0
      %s20 = sshll.u32 %s0, 4
      %s21 = int_to_ptr.hbm [resolvable:$true] %s20
      %s22 = sshll.u32 [#allocation2], 4
      %s23 = int_to_ptr.vmem [resolvable:$true] %s22
      %25 = dma.hbm_to_vmem [thread:$0]  %s21, 128, %s23, [#allocation3]
    $region5: #{tpu_custom_call.1} parent=1 // pred_fallthru
      _
    // Predicated region
    $region6: #{tpu_custom_call.1} parent=1 // pred_check
      _
    $region7: #{tpu_custom_call.1} parent=1 // pred_check_branch
      %27 = sbr.rel (0) target = $region9
    $region8: #{tpu_custom_call.1} parent=1 // pred_region
      %29 = vsyncadd [#allocation6], 0
      %s31 = sshll.u32 %s1, 4
      %s32 = int_to_ptr.hbm [resolvable:$true] %s31
      %s33 = sshll.u32 [#allocation5], 4
      %s34 = int_to_ptr.vmem [resolvable:$true] %s33
      %36 = dma.hbm_to_vmem [thread:$0]  %s32, 16, %s34, [#allocation6]
    $region9: #{tpu_custom_call.1} parent=1 // pred_fallthru
      _
    // Predicated region
    $region10: #{tpu_custom_call.1} parent=1 // pred_check
      _
    $region11: #{tpu_custom_call.1} parent=1 // pred_check_branch
      %38 = sbr.rel (0) target = $region13
    $region12: #{tpu_custom_call.1} parent=1 // pred_region
      _
    $region13: #{tpu_custom_call.1} parent=1 // pred_fallthru
      _
    // Predicated region
    $region14: #{tpu_custom_call.1} parent=1 // pred_check
      _
    $region15: #{tpu_custom_call.1} parent=1 // pred_check_branch
      %40 = sbr.rel (0) target = $region17
    $region16: #{tpu_custom_call.1} parent=1 // pred_region
      %42 = dma.done [#allocation3], 128
    $region17: #{tpu_custom_call.1} parent=1 // pred_fallthru
      _
    // Predicated region
    $region18: #{tpu_custom_call.1} parent=1 // pred_check
      _
    $region19: #{tpu_custom_call.1} parent=1 // pred_check_branch
      %44 = sbr.rel (0) target = $region21
    $region20: #{tpu_custom_call.1} parent=1 // pred_region
      %46 = dma.done [#allocation6], 16
    $region21: #{tpu_custom_call.1} parent=1 // pred_fallthru
      _
    %v47 = vld [vmem:[#allocation2] sm:$0xff]
    %v48 = vlaneseq
    %v49 = vshrl.u32 %v48, 7
    %v50 = vadd.s32 %v49, 8
    %v51 = vadd.s32 %v49, 16
    %v52 = vadd.s32 %v49, 24
    %v53 = vadd.s32 %v49, 32
    %v54 = vadd.s32 %v49, 40
    %v55 = vadd.s32 %v49, 48
    %v56 = vadd.s32 %v49, 56
    %v57 = vadd.s32 %v49, 64
    %v58 = vadd.s32 %v49, 72
    %v59 = vadd.s32 %v49, 80
    %v60 = vadd.s32 %v49, 88
    %v61 = vadd.s32 %v49, 96
    %v62 = vadd.s32 %v49, 104
    %v63 = vadd.s32 %v49, 112
    %v64 = vadd.s32 %v49, 120
    %vm65 = vcmp.lt.s32.totalorder %v49, 0
    %v66 = vsub.s32 0, %v49
    %v67 = vsel %vm65, %v66, %v49
    %v68 = vshrl.u32 %v67, 4
    %v69 = vand.u32 %v67, 15
    %v70 = vsub.s32 0, %v69
    %v71 = vsel %vm65, %v70, %v69
    %vm72 = vcmp.lt.s32.totalorder %v50, 0
    %v73 = vsub.s32 0, %v50
    %v74 = vsel %vm72, %v73, %v50
    %v75 = vshrl.u32 %v74, 4
    %v76 = vand.u32 %v74, 15
    %v77 = vsub.s32 0, %v76
    %v78 = vsel %vm72, %v77, %v76
    %vm79 = vcmp.lt.s32.totalorder %v51, 0
    %v80 = vsub.s32 0, %v51
    %v81 = vsel %vm79, %v80, %v51
    %v82 = vshrl.u32 %v81, 4
    %v83 = vand.u32 %v81, 15
    %v84 = vsub.s32 0, %v83
    %v85 = vsel %vm79, %v84, %v83
    %vm86 = vcmp.lt.s32.totalorder %v52, 0
    %v87 = vsub.s32 0, %v52
    %v88 = vsel %vm86, %v87, %v52
    %v89 = vshrl.u32 %v88, 4
    %v90 = vand.u32 %v88, 15
    %v91 = vsub.s32 0, %v90
    %v92 = vsel %vm86, %v91, %v90
    %vm93 = vcmp.lt.s32.totalorder %v53, 0
    %v94 = vsub.s32 0, %v53
    %v95 = vsel %vm93, %v94, %v53
    %v96 = vshrl.u32 %v95, 4
    %v97 = vand.u32 %v95, 15
    %v98 = vsub.s32 0, %v97
    %v99 = vsel %vm93, %v98, %v97
    %vm100 = vcmp.lt.s32.totalorder %v54, 0
    %v101 = vsub.s32 0, %v54
    %v102 = vsel %vm100, %v101, %v54
    %v103 = vshrl.u32 %v102, 4
    %v104 = vand.u32 %v102, 15
    %v105 = vsub.s32 0, %v104
    %v106 = vsel %vm100, %v105, %v104
    %vm107 = vcmp.lt.s32.totalorder %v55, 0
    %v108 = vsub.s32 0, %v55
    %v109 = vsel %vm107, %v108, %v55
    %v110 = vshrl.u32 %v109, 4
    %v111 = vand.u32 %v109, 15
    %v112 = vsub.s32 0, %v111
    %v113 = vsel %vm107, %v112, %v111
    %vm114 = vcmp.lt.s32.totalorder %v56, 0
    %v115 = vsub.s32 0, %v56
    %v116 = vsel %vm114, %v115, %v56
    %v117 = vshrl.u32 %v116, 4
    %v118 = vand.u32 %v116, 15
    %v119 = vsub.s32 0, %v118
    %v120 = vsel %vm114, %v119, %v118
    %vm121 = vcmp.lt.s32.totalorder %v57, 0
    %v122 = vsub.s32 0, %v57
    %v123 = vsel %vm121, %v122, %v57
    %v124 = vshrl.u32 %v123, 4
    %v125 = vand.u32 %v123, 15
    %v126 = vsub.s32 0, %v125
    %v127 = vsel %vm121, %v126, %v125
    %vm128 = vcmp.lt.s32.totalorder %v58, 0
    %v129 = vsub.s32 0, %v58
    %v130 = vsel %vm128, %v129, %v58
    %v131 = vshrl.u32 %v130, 4
    %v132 = vand.u32 %v130, 15
    %v133 = vsub.s32 0, %v132
    %v134 = vsel %vm128, %v133, %v132
    %vm135 = vcmp.lt.s32.totalorder %v59, 0
    %v136 = vsub.s32 0, %v59
    %v137 = vsel %vm135, %v136, %v59
    %v138 = vshrl.u32 %v137, 4
    %v139 = vand.u32 %v137, 15
    %v140 = vsub.s32 0, %v139
    %v141 = vsel %vm135, %v140, %v139
    %vm142 = vcmp.lt.s32.totalorder %v60, 0
    %v143 = vsub.s32 0, %v60
    %v144 = vsel %vm142, %v143, %v60
    %v145 = vshrl.u32 %v144, 4
    %v146 = vand.u32 %v144, 15
    %v147 = vsub.s32 0, %v146
    %v148 = vsel %vm142, %v147, %v146
    %vm149 = vcmp.lt.s32.totalorder %v61, 0
    %v150 = vsub.s32 0, %v61
    %v151 = vsel %vm149, %v150, %v61
    %v152 = vshrl.u32 %v151, 4
    %v153 = vand.u32 %v151, 15
    %v154 = vsub.s32 0, %v153
    %v155 = vsel %vm149, %v154, %v153
    %vm156 = vcmp.lt.s32.totalorder %v62, 0
    %v157 = vsub.s32 0, %v62
    %v158 = vsel %vm156, %v157, %v62
    %v159 = vshrl.u32 %v158, 4
    %v160 = vand.u32 %v158, 15
    %v161 = vsub.s32 0, %v160
    %v162 = vsel %vm156, %v161, %v160
    %vm163 = vcmp.lt.s32.totalorder %v63, 0
    %v164 = vsub.s32 0, %v63
    %v165 = vsel %vm163, %v164, %v63
    %v166 = vshrl.u32 %v165, 4
    %v167 = vand.u32 %v165, 15
    %v168 = vsub.s32 0, %v167
    %v169 = vsel %vm163, %v168, %v167
    %vm170 = vcmp.lt.s32.totalorder %v64, 0
    %v171 = vsub.s32 0, %v64
    %v172 = vsel %vm170, %v171, %v64
    %v173 = vshrl.u32 %v172, 4
    %v174 = vand.u32 %v172, 15
    %v175 = vsub.s32 0, %v174
    %v176 = vsel %vm170, %v175, %v174
    %vm177 = vcmp.ne.s32.totalorder %v71, 0
    %vm178 = vcmp.ne.s32.totalorder %v78, 0
    %vm179 = vcmp.ne.s32.totalorder %v85, 0
    %vm180 = vcmp.ne.s32.totalorder %v92, 0
    %vm181 = vcmp.ne.s32.totalorder %v99, 0
    %vm182 = vcmp.ne.s32.totalorder %v106, 0
    %vm183 = vcmp.ne.s32.totalorder %v113, 0
    %vm184 = vcmp.ne.s32.totalorder %v120, 0
    %vm185 = vcmp.ne.s32.totalorder %v127, 0
    %vm186 = vcmp.ne.s32.totalorder %v134, 0
    %vm187 = vcmp.ne.s32.totalorder %v141, 0
    %vm188 = vcmp.ne.s32.totalorder %v148, 0
    %vm189 = vcmp.ne.s32.totalorder %v155, 0
    %vm190 = vcmp.ne.s32.totalorder %v162, 0
    %vm191 = vcmp.ne.s32.totalorder %v169, 0
    %vm192 = vcmp.ne.s32.totalorder %v176, 0
    %vm193 = vcmp.lt.s32.totalorder %v71, 0
    %vm194 = vcmp.lt.s32.totalorder %v78, 0
    %vm195 = vcmp.lt.s32.totalorder %v85, 0
    %vm196 = vcmp.lt.s32.totalorder %v92, 0
    %vm197 = vcmp.lt.s32.totalorder %v99, 0
    %vm198 = vcmp.lt.s32.totalorder %v106, 0
    %vm199 = vcmp.lt.s32.totalorder %v113, 0
    %vm200 = vcmp.lt.s32.totalorder %v120, 0
    %vm201 = vcmp.lt.s32.totalorder %v127, 0
    %vm202 = vcmp.lt.s32.totalorder %v134, 0
    %vm203 = vcmp.lt.s32.totalorder %v141, 0
    %vm204 = vcmp.lt.s32.totalorder %v148, 0
    %vm205 = vcmp.lt.s32.totalorder %v155, 0
    %vm206 = vcmp.lt.s32.totalorder %v162, 0
    %vm207 = vcmp.lt.s32.totalorder %v169, 0
    %vm208 = vcmp.lt.s32.totalorder %v176, 0
    %vm209 = vmand %vm193, %vm177
    %vm210 = vmand %vm194, %vm178
    %vm211 = vmand %vm195, %vm179
    %vm212 = vmand %vm196, %vm180
    %vm213 = vmand %vm197, %vm181
    %vm214 = vmand %vm198, %vm182
    %vm215 = vmand %vm199, %vm183
    %vm216 = vmand %vm200, %vm184
    %vm217 = vmand %vm201, %vm185
    %vm218 = vmand %vm202, %vm186
    %vm219 = vmand %vm203, %vm187
    %vm220 = vmand %vm204, %vm188
    %vm221 = vmand %vm205, %vm189
    %vm222 = vmand %vm206, %vm190
    %vm223 = vmand %vm207, %vm191
    %vm224 = vmand %vm208, %vm192
    %v225 = vadd.s32 %v71, 16
    %v226 = vadd.s32 %v78, 16
    %v227 = vadd.s32 %v85, 16
    %v228 = vadd.s32 %v92, 16
    %v229 = vadd.s32 %v99, 16
    %v230 = vadd.s32 %v106, 16
    %v231 = vadd.s32 %v113, 16
    %v232 = vadd.s32 %v120, 16
    %v233 = vadd.s32 %v127, 16
    %v234 = vadd.s32 %v134, 16
    %v235 = vadd.s32 %v141, 16
    %v236 = vadd.s32 %v148, 16
    %v237 = vadd.s32 %v155, 16
    %v238 = vadd.s32 %v162, 16
    %v239 = vadd.s32 %v169, 16
    %v240 = vadd.s32 %v176, 16
    %v241 = vsel %vm209, %v225, %v71
    %v242 = vsel %vm210, %v226, %v78
    %v243 = vsel %vm211, %v227, %v85
    %v244 = vsel %vm212, %v228, %v92
    %v245 = vsel %vm213, %v229, %v99
    %v246 = vsel %vm214, %v230, %v106
    %v247 = vsel %vm215, %v231, %v113
    %v248 = vsel %vm216, %v232, %v120
    %v249 = vsel %vm217, %v233, %v127
    %v250 = vsel %vm218, %v234, %v134
    %v251 = vsel %vm219, %v235, %v141
    %v252 = vsel %vm220, %v236, %v148
    %v253 = vsel %vm221, %v237, %v155
    %v254 = vsel %vm222, %v238, %v162
    %v255 = vsel %vm223, %v239, %v169
    %v256 = vsel %vm224, %v240, %v176
    %v257 = vlaneseq
    %v258 = vand.u32 %v257, 127
    %vm259 = vcmp.lt.s32.totalorder %v258, 0
    %v260 = vsub.s32 0, %v258
    %v261 = vsel %vm259, %v260, %v258
    %v262 = vshrl.u32 %v261, 4
    %v263 = vand.u32 %v261, 15
    %v264 = vsub.s32 0, %v263
    %v265 = vsel %vm259, %v264, %v263
    %vm266 = vcmp.ne.s32.totalorder %v265, 0
    %vm267 = vcmp.lt.s32.totalorder %v265, 0
    %vm268 = vmand %vm267, %vm266
    %v269 = vadd.s32 %v265, 16
    %v270 = vsel %vm268, %v269, %v265
    %vm271 = vcmp.eq.s32.totalorder %v241, %v270
    %vm272 = vcmp.eq.s32.totalorder %v242, %v270
    %vm273 = vcmp.eq.s32.totalorder %v243, %v270
    %vm274 = vcmp.eq.s32.totalorder %v244, %v270
    %vm275 = vcmp.eq.s32.totalorder %v245, %v270
    %vm276 = vcmp.eq.s32.totalorder %v246, %v270
    %vm277 = vcmp.eq.s32.totalorder %v247, %v270
    %vm278 = vcmp.eq.s32.totalorder %v248, %v270
    %vm279 = vcmp.eq.s32.totalorder %v249, %v270
    %vm280 = vcmp.eq.s32.totalorder %v250, %v270
    %vm281 = vcmp.eq.s32.totalorder %v251, %v270
    %vm282 = vcmp.eq.s32.totalorder %v252, %v270
    %vm283 = vcmp.eq.s32.totalorder %v253, %v270
    %vm284 = vcmp.eq.s32.totalorder %v254, %v270
    %vm285 = vcmp.eq.s32.totalorder %v255, %v270
    %vm286 = vcmp.eq.s32.totalorder %v256, %v270
    %v287 = vsel %vm271, 1, 0
    %v288 = vsel %vm272, 1, 0
    %v289 = vsel %vm273, 1, 0
    %v290 = vsel %vm274, 1, 0
    %v291 = vsel %vm275, 1, 0
    %v292 = vsel %vm276, 1, 0
    %v293 = vsel %vm277, 1, 0
    %v294 = vsel %vm278, 1, 0
    %v295 = vsel %vm279, 1, 0
    %v296 = vsel %vm280, 1, 0
    %v297 = vsel %vm281, 1, 0
    %v298 = vsel %vm282, 1, 0
    %v299 = vsel %vm283, 1, 0
    %v300 = vsel %vm284, 1, 0
    %v301 = vsel %vm285, 1, 0
    %v302 = vsel %vm286, 1, 0
    %v303 = vcvt.s32.f32 %v287
    %v304 = vcvt.s32.f32 %v288
    %v305 = vcvt.s32.f32 %v289
    %v306 = vcvt.s32.f32 %v290
    %v307 = vcvt.s32.f32 %v291
    %v308 = vcvt.s32.f32 %v292
    %v309 = vcvt.s32.f32 %v293
    %v310 = vcvt.s32.f32 %v294
    %v311 = vcvt.s32.f32 %v295
    %v312 = vcvt.s32.f32 %v296
    %v313 = vcvt.s32.f32 %v297
    %v314 = vcvt.s32.f32 %v298
    %v315 = vcvt.s32.f32 %v299
    %v316 = vcvt.s32.f32 %v300
    %v317 = vcvt.s32.f32 %v301
    %v318 = vcvt.s32.f32 %v302
    %v319 = vrot.slane %v47, 4
    %v320 = vadd.f32 %v47, %v319
    %v321 = vrot.slane %v320, 2
    %v322 = vadd.f32 %v320, %v321
    %v323 = vrot.slane %v322, 1
    %v324 = vadd.f32 %v322, %v323
    %325 = vmatpush.msra.mxu0 %v318
    %326 = vmatpush.msra.mxu0 %v317
    %327 = vmatpush.msra.mxu0 %v316
    %328 = vmatpush.msra.mxu0 %v315
    %329 = vmatpush.msra.mxu0 %v314
    %330 = vmatpush.msra.mxu0 %v313
    %331 = vmatpush.msra.mxu0 %v312
    %332 = vmatpush.msra.mxu0 %v311
    %333 = vmatpush.msra.mxu0 %v310
    %334 = vmatpush.msra.mxu0 %v309
    %335 = vmatpush.msra.mxu0 %v308
    %336 = vmatpush.msra.mxu0 %v307
    %337 = vmatpush.msra.mxu0 %v306
    %338 = vmatpush.msra.mxu0 %v305
    %339 = vmatpush.msra.mxu0 %v304
    %340 = vmatpush.msra.mxu0 %v303
    %341 = vmatmul.f32.gmra.mxu0 %v324
    %v342 = vpop.f32.mrf.mxu0
    %v343 = vadd.f32 0.0, %v342
    %344 = vdwg.mxu0
    %v345 = vmul.f32 %v343, 0.015625
    %v346 = vperm.slane %v345, 0
    %v347 = vsub.f32 %v47, %v346
    %v348 = vmul.f32 %v347, %v347
    %v349 = vrot.slane %v348, 4
    %v350 = vadd.f32 %v348, %v349
    %v351 = vrot.slane %v350, 2
    %v352 = vadd.f32 %v350, %v351
    %v353 = vrot.slane %v352, 1
    %v354 = vadd.f32 %v352, %v353
    %355 = vmatpush.msra.mxu0 %v318
    %356 = vmatpush.msra.mxu0 %v317
    %357 = vmatpush.msra.mxu0 %v316
    %358 = vmatpush.msra.mxu0 %v315
    %359 = vmatpush.msra.mxu0 %v314
    %360 = vmatpush.msra.mxu0 %v313
    %361 = vmatpush.msra.mxu0 %v312
    %362 = vmatpush.msra.mxu0 %v311
    %363 = vmatpush.msra.mxu0 %v310
    %364 = vmatpush.msra.mxu0 %v309
    %365 = vmatpush.msra.mxu0 %v308
    %366 = vmatpush.msra.mxu0 %v307
    %367 = vmatpush.msra.mxu0 %v306
    %368 = vmatpush.msra.mxu0 %v305
    %369 = vmatpush.msra.mxu0 %v304
    %370 = vmatpush.msra.mxu0 %v303
    %371 = vmatmul.f32.gmra.mxu0 %v354
    %v372 = vpop.f32.mrf.mxu0
    %v373 = vadd.f32 0.0, %v372
    %374 = vdwg.mxu0
    %v375 = vmul.f32 %v373, 0.015625
    %v376 = vmax.f32 %v375, 0.0
    %v377 = vld [vmem:[#allocation5] sm:$0x1]
    %v378 = vadd.f32 %v376, 1e-05
    %v379 = vrsqrt.pop %v378
    %v380 = vmul.f32 %v379, %v378
    %v381 = vmul.f32 %v380, %v379
    %v382 = vmul.f32 0.5, %v381
    %v383 = vsub.f32 1.5, %v382
    %v384 = vmul.f32 %v379, %v383
    %vm385 = vweird.f32 %v378
    %vm386 = vweird.f32 %v379
    %vm387 = vmor %vm385, %vm386
    %v388 = vsel %vm387, %v379, %v384
    %v389 = vmul.f32 %v377, %v388
    %v390 = vld [vmem:[%s2] sm:$0x1]
    %v391 = vmul.f32 %v345, %v389
    %v392 = vsub.f32 %v390, %v391
    %v394 = vperm.slane %v389, 0
    %v396 = vmul.f32 %v47, %v394
    %v398 = vperm.slane %v392, 0
    %v400 = vadd.f32 %v396, %v398
    %401 = vst [vmem:[#allocation7] sm:$0xff] %v400
    %402 = vst [vmem:[#allocation8] sm:$0x1] %v345
    %403 = vst [vmem:[#allocation10] sm:$0x1] %v376
    // Predicated region
    $region22: #{tpu_custom_call.1} parent=1 // pred_check
      _
    $region23: #{tpu_custom_call.1} parent=1 // pred_check_branch
      %405 = sbr.rel (0) target = $region25
    $region24: #{tpu_custom_call.1} parent=1 // pred_region
      %407 = vsyncadd [#allocation4], 0
      %s409 = sshll.u32 [#allocation7], 4
      %s410 = int_to_ptr.vmem [resolvable:$true] %s409
      %s411 = sshll.u32 %s3, 4
      %s412 = int_to_ptr.hbm [resolvable:$true] %s411
      %414 = dma.vmem_to_hbm [thread:$0]  %s410, 128, %s412, [#allocation4]
    $region25: #{tpu_custom_call.1} parent=1 // pred_fallthru
      _
    // Predicated region
    $region26: #{tpu_custom_call.1} parent=1 // pred_check
      _
    $region27: #{tpu_custom_call.1} parent=1 // pred_check_branch
      %416 = sbr.rel (0) target = $region29
    $region28: #{tpu_custom_call.1} parent=1 // pred_region
      %418 = vsyncadd [#allocation9], 0
      %s420 = sshll.u32 [#allocation8], 4
      %s421 = int_to_ptr.vmem [resolvable:$true] %s420
      %s422 = sshll.u32 %s4, 4
      %s423 = int_to_ptr.hbm [resolvable:$true] %s422
      %425 = dma.vmem_to_hbm [thread:$0]  %s421, 16, %s423, [#allocation9]
    $region29: #{tpu_custom_call.1} parent=1 // pred_fallthru
      _
    // Predicated region
    $region30: #{tpu_custom_call.1} parent=1 // pred_check
      _
    $region31: #{tpu_custom_call.1} parent=1 // pred_check_branch
      %427 = sbr.rel (0) target = $region33
    $region32: #{tpu_custom_call.1} parent=1 // pred_region
      %429 = vsyncadd [#allocation9], 0
      %s431 = sshll.u32 [#allocation10], 4
      %s432 = int_to_ptr.vmem [resolvable:$true] %s431
      %s433 = sshll.u32 %s5, 4
      %s434 = int_to_ptr.hbm [resolvable:$true] %s433
      %436 = dma.vmem_to_hbm [thread:$0]  %s432, 16, %s434, [#allocation9]
    $region33: #{tpu_custom_call.1} parent=1 // pred_fallthru
      _
    // Predicated region
    $region34: #{tpu_custom_call.1} parent=1 // pred_check
      _
    $region35: #{tpu_custom_call.1} parent=1 // pred_check_branch
      %438 = sbr.rel (0) target = $region37
    $region36: #{tpu_custom_call.1} parent=1 // pred_region
      %440 = dma.done [#allocation4], 128
    $region37: #{tpu_custom_call.1} parent=1 // pred_fallthru
      _
    // Predicated region
    $region38: #{tpu_custom_call.1} parent=1 // pred_check
      _
    $region39: #{tpu_custom_call.1} parent=1 // pred_check_branch
      %442 = sbr.rel (0) target = $region41
    $region40: #{tpu_custom_call.1} parent=1 // pred_region
      %444 = dma.done [#allocation9], 16
    $region41: #{tpu_custom_call.1} parent=1 // pred_fallthru
      _
    // Predicated region
    $region42: #{tpu_custom_call.1} parent=1 // pred_check
      _
    $region43: #{tpu_custom_call.1} parent=1 // pred_check_branch
      %446 = sbr.rel (0) target = $region45
    $region44: #{tpu_custom_call.1} parent=1 // pred_region
      %448 = dma.done [#allocation9], 16
    $region45: #{tpu_custom_call.1} parent=1 // pred_fallthru
      _
    %449 = vsyncpa [#allocation3], 1
    %450 = vsyncpa [#allocation6], 1
    %451 = vsyncpa [#allocation4], 1
    %452 = vsyncpa [#allocation9], 1

</llo_original>
